<compile_context>
chip_gen: v5e
topology: v5e:2x2
jax: 0.10.0
libtpu: 0.0.40
codegen_flags: <defaults>
</compile_context>

<pallas_src>
import math

import jax
import jax.numpy as jnp
from jax.experimental import pallas as pl
from jax.experimental.pallas import tpu as pltpu


_MAX_INFLIGHT_DMAS = 4   # DMA semaphores kept in flight (round-robin)
_MAX_CHUNKS = 16         # bounds the trace-time unroll of the chunk loop


def _make_flatten_dma_kernel(n_rows, chunk_rows, num_slots):
    """Chunked HBM->HBM copy of an (n_rows, flat) buffer, no VMEM staging."""
    num_chunks = -(-n_rows // chunk_rows)

    def kernel(x_hbm, o_hbm, sems):
        pending = [None] * num_slots
        for c in range(num_chunks):            # static unroll (<= _MAX_CHUNKS)
            slot = c % num_slots
            start = c * chunk_rows
            rows = min(chunk_rows, n_rows - start)
            if pending[slot] is not None:
                # One outstanding DMA per semaphore slot: wait before reuse so
                # signal/wait amounts on each semaphore always match.
                pending[slot].wait()
            cp = pltpu.make_async_copy(
                x_hbm.at[pl.ds(start, rows)],
                o_hbm.at[pl.ds(start, rows)],
                sems.at[slot],
            )
            cp.start()
            pending[slot] = cp
        for cp in pending:                     # drain remaining in-flight DMAs
            if cp is not None:
                cp.wait()

    return kernel


def flatten_layer(x, *, materialize=True, target_chunk_bytes=8 * 1024 * 1024):
    """Equivalent of FlattenLayer.forward: x.reshape(x.shape[0], -1)."""
    n = x.shape[0]
    flat = int(math.prod(x.shape[1:])) if x.ndim > 1 else 1
    x2d = x.reshape(n, flat)  # metadata-only for a contiguous input

    # Flatten is a pure re-view; this is the free path (zero HBM traffic) and
    # should be preferred whenever a distinct materialized buffer is not
    # strictly required by the caller.
    if not materialize or n == 0 or flat == 0:
        return x2d

    itemsize = jnp.dtype(x.dtype).itemsize
    row_bytes = flat * itemsize

    # Chunk along the contiguous batch axis: ~8 MiB per DMA, at most
    # _MAX_CHUNKS chunks (bounded unroll), chunk starts 8-row aligned.
    chunk_rows = max(1, target_chunk_bytes // max(1, row_bytes))
    chunk_rows = max(chunk_rows, -(-n // _MAX_CHUNKS))
    if chunk_rows < n:
        chunk_rows = min(n, ((chunk_rows + 7) // 8) * 8)
    else:
        chunk_rows = n
    num_chunks = -(-n // chunk_rows)
    num_slots = max(1, min(_MAX_INFLIGHT_DMAS, num_chunks))

    kernel = _make_flatten_dma_kernel(n, chunk_rows, num_slots)

    out2d = pl.pallas_call(
        kernel,
        out_shape=jax.ShapeDtypeStruct((n, flat), x.dtype),
        # Raw HBM refs on both sides: no auto-DMA, no VMEM staging.
        in_specs=[pl.BlockSpec(memory_space=pl.ANY)],
        out_specs=pl.BlockSpec(memory_space=pl.ANY),
        scratch_shapes=[pltpu.SemaphoreType.DMA((num_slots,))],
        cost_estimate=pl.CostEstimate(
            flops=0,
            transcendentals=0,
            bytes_accessed=2 * n * flat * itemsize,
        ),
    )(x2d)

    return out2d  # (batch, prod(rest)) == x.reshape(x.shape[0], -1)


if __name__ == "__main__":
    key = jax.random.PRNGKey(0)

    # Primary case: conv feature map N=2, C=4, H=W=16 -> (2, 1024).
    x = jax.random.normal(key, (2, 4, 16, 16), dtype=jnp.float32)
    out = jax.block_until_ready(flatten_layer(x))
    ref = x.reshape(x.shape[0], -1)
    assert out.shape == (2, 4 * 16 * 16), out.shape
    assert jnp.array_equal(out, ref)

    # Ragged shape (nothing is a multiple of 8 or 128): single-DMA path.
    x2 = jax.random.normal(jax.random.PRNGKey(0), (3, 5, 7), dtype=jnp.float32)
    out2 = jax.block_until_ready(flatten_layer(x2))
    assert out2.shape == (3, 35), out2.shape
    assert jnp.array_equal(out2, x2.reshape(3, -1))

    # Multi-chunk round-robin path: tiny chunk target forces 6 chunks of 8 rows
    # across 4 DMA semaphore slots (exercises wait-before-reuse + drain).
    x3 = jax.random.normal(jax.random.PRNGKey(0), (48, 3, 11), dtype=jnp.float32)
    out3 = jax.block_until_ready(flatten_layer(x3, target_chunk_bytes=512))
    assert out3.shape == (48, 33), out3.shape
    assert jnp.array_equal(out3, x3.reshape(48, -1))

    # Zero-copy (metadata-only) path, the recommended default inside pipelines.
    out4 = flatten_layer(x, materialize=False)
    assert jnp.array_equal(out4, ref)

    print("KERNEL_OK")
</pallas_src>

<mosaic_0001>
module attributes {stable_mosaic.version = 11 : i64} {
  func.func @kernel(%arg0: memref<2x1024xf32, #tpu.memory_space<any>>, %arg1: memref<2x1024xf32, #tpu.memory_space<any>>, %arg2: memref<1x!tpu.dma_semaphore, #tpu.memory_space<semaphore_mem>>) attributes {dimension_semantics = [], scalar_prefetch = 0 : i64, scratch_operands = 1 : i64, tpu.core_type = #tpu.core_type<tc>} {
    %c0_i32 = arith.constant 0 : i32
    %c0_i32_0 = arith.constant 0 : i32
    %c0_i32_1 = arith.constant 0 : i32
    %0 = tpu.memref_slice %arg0[%c0_i32_0, %c0_i32_1] : memref<2x1024xf32, #tpu.memory_space<any>> -> memref<2x1024xf32, #tpu.memory_space<any>>
    %c0_i32_2 = arith.constant 0 : i32
    %c0_i32_3 = arith.constant 0 : i32
    %1 = tpu.memref_slice %arg1[%c0_i32_2, %c0_i32_3] : memref<2x1024xf32, #tpu.memory_space<any>> -> memref<2x1024xf32, #tpu.memory_space<any>>
    %2 = tpu.memref_slice %arg2[%c0_i32] : memref<1x!tpu.dma_semaphore, #tpu.memory_space<semaphore_mem>> -> memref<1x!tpu.dma_semaphore, #tpu.memory_space<semaphore_mem>>
    %3 = tpu.memref_squeeze %2 : memref<1x!tpu.dma_semaphore, #tpu.memory_space<semaphore_mem>> -> memref<!tpu.dma_semaphore, #tpu.memory_space<semaphore_mem>>
    tpu.enqueue_dma source(%0 : memref<2x1024xf32, #tpu.memory_space<any>>) target(%1 : memref<2x1024xf32, #tpu.memory_space<any>>) target_semaphore(%3 : memref<!tpu.dma_semaphore, #tpu.memory_space<semaphore_mem>>)
    %c0_i32_4 = arith.constant 0 : i32
    %c0_i32_5 = arith.constant 0 : i32
    %c0_i32_6 = arith.constant 0 : i32
    %4 = tpu.memref_slice %arg0[%c0_i32_5, %c0_i32_6] : memref<2x1024xf32, #tpu.memory_space<any>> -> memref<2x1024xf32, #tpu.memory_space<any>>
    %c0_i32_7 = arith.constant 0 : i32
    %c0_i32_8 = arith.constant 0 : i32
    %5 = tpu.memref_slice %arg1[%c0_i32_7, %c0_i32_8] : memref<2x1024xf32, #tpu.memory_space<any>> -> memref<2x1024xf32, #tpu.memory_space<any>>
    %6 = tpu.memref_slice %arg2[%c0_i32_4] : memref<1x!tpu.dma_semaphore, #tpu.memory_space<semaphore_mem>> -> memref<1x!tpu.dma_semaphore, #tpu.memory_space<semaphore_mem>>
    %7 = tpu.memref_squeeze %6 : memref<1x!tpu.dma_semaphore, #tpu.memory_space<semaphore_mem>> -> memref<!tpu.dma_semaphore, #tpu.memory_space<semaphore_mem>>
    tpu.wait_dma2 semaphore(%7 : memref<!tpu.dma_semaphore, #tpu.memory_space<semaphore_mem>>) src(%4 : memref<2x1024xf32, #tpu.memory_space<any>>) dst(%5 : memref<2x1024xf32, #tpu.memory_space<any>>)
    return
  }
}

</mosaic_0001>

<llo_original>
// kernel: tpu_custom_call.1
$region0: #{tpu_custom_call.1}
  #allocation0 [shape = 'u32[]', space=smem, size = 0x4, offset = 0x4, fixed_abs, tag = 'smem constant byte address 0x4 - core index']
  #allocation1 [shape = 'u32[72,128]{1,0:T(1,128)}', space=vmem, size = 0x9000, scoped, tag = 'internal scratch']
  #allocation2 [shape = 's32[1]{0}', space=sflag, size = 0x4, scoped, tag = 'scratch operand']
  #allocation3 [shape = 's32[]', space=sflag, size = 0x4, offset = 0, fixed_abs, tag = 'sflag constant byte address 0x0 - dummy sync flag']
  #allocation4 [shape = 'u32[0]{0}', space=smem, size = 0, offset = 0, fixed_abs, tag = 'smem constant byte address 0x0 - null']
  %s0 = inlined_call_operand.hbm [shape: f32[2,1024], index: 0, kind: input, shape index: {}]
  %s1 = inlined_call_operand.hbm [shape: f32[2,1024], index: 1, kind: output, shape index: {}]
  %s2 = sld [smem:[#allocation0]]
  $region2: #{tpu_custom_call.1} parent=0
    _
  %s4 = ssub.s32 1, %s2
  %s5 = scalar_select 0, %s4, %s2
  %s7 = sshll.u32 1, 14
  %s8 = sxor.u32 4294967295, %s7
  %s10 = sshll.u32 %s0, 4
  %s11 = int_to_ptr.hbm [resolvable:$true] %s10
  %s12 = sshll.u32 %s1, 4
  %s13 = int_to_ptr.hbm [resolvable:$true] %s12
  %16 = dma.general %s11, 256, %s13, [#allocation2], [#allocation3], [#allocation4], 0, 0
  %s17 = smul.u32 2, 1
  %s18 = smul.u32 %s17, 8
  %s19 = sshll.u32 %s18, 4
  %20 = dma.done [#allocation2], %s19
  %21 = vsyncmov [#allocation2]
  %s22 = vpop.sfrf %21
  %p23 = scmp.eq.s32.totalorder %s22, 0
  %p24 = pneg %p23
  %26 = shalt.err (%p24)

</llo_original>
